<compile_context>
chip_gen: v7x
topology: tpu7x:2x2x1
jax: 0.10.0
libtpu: 0.0.40
codegen_flags: <defaults>
</compile_context>

<pallas_src>
import jax
import jax.numpy as jnp
from jax.experimental import pallas as pl
from jax.experimental.pallas import tpu as pltpu


_TM_CAP = 512  # rows per batch block; multiple of 8, VMEM-safe on v5e/v6e/v7x


# ---------------------------------------------------------------------------
# Kernel bodies
# ---------------------------------------------------------------------------
def _mlp(x, w1, b1, w2, b2, w3, b3, w4, b4, compute_dtype=jnp.float32):
    """Linear(in,32)->ReLU->Linear(32,64)->ReLU->Linear(64,32)->ReLU->Linear(32,L)."""
    def dense(h, w, b):
        return jnp.dot(h.astype(compute_dtype), w.astype(compute_dtype),
                       preferred_element_type=jnp.float32) + b
    h = jnp.maximum(dense(x, w1, b1), 0.0)
    h = jnp.maximum(dense(h, w2, b2), 0.0)
    h = jnp.maximum(dense(h, w3, b3), 0.0)
    return dense(h, w4, b4)


def make_logits_kernel(compute_dtype):
    def kernel(x_ref, w1_ref, b1_ref, w2_ref, b2_ref, w3_ref, b3_ref,
               w4_ref, b4_ref, out_ref):
        out_ref[...] = _mlp(x_ref[...], w1_ref[...], b1_ref[...],
                            w2_ref[...], b2_ref[...],
                            w3_ref[...], b3_ref[...],
                            w4_ref[...], b4_ref[...],
                            compute_dtype).astype(out_ref.dtype)
    return kernel


def make_loss_kernel(batch_actual, tm, num_blocks, compute_dtype):
    def kernel(x_ref, w1_ref, b1_ref, w2_ref, b2_ref, w3_ref, b3_ref,
               w4_ref, b4_ref, lab_ref, out_ref, loss_ref):
        logits = _mlp(x_ref[...], w1_ref[...], b1_ref[...],
                      w2_ref[...], b2_ref[...],
                      w3_ref[...], b3_ref[...],
                      w4_ref[...], b4_ref[...], compute_dtype)
        out_ref[...] = logits.astype(out_ref.dtype)

        # Stable log-sum-exp cross entropy (nn.CrossEntropyLoss, mean reduction).
        m = jnp.max(logits, axis=-1, keepdims=True)
        lse = m + jnp.log(jnp.sum(jnp.exp(logits - m), axis=-1, keepdims=True))
        onehot = jax.lax.broadcasted_iota(jnp.int32, logits.shape, 1) == lab_ref[...]
        picked = jnp.sum(jnp.where(onehot, logits, 0.0), axis=-1, keepdims=True)
        per_example = lse - picked                                   # (tm, 1)

        if num_blocks == 1:
            # Whole batch visible in one block: straight mean, no grid state.
            loss_ref[...] = (jnp.sum(per_example, axis=0, keepdims=True)
                             / float(batch_actual))
        else:
            i = pl.program_id(0)
            # Mask rows that are batch padding.
            row = i * tm + jax.lax.broadcasted_iota(
                jnp.int32, per_example.shape, 0)
            per_example = jnp.where(row < batch_actual, per_example, 0.0)

            @pl.when(i == 0)
            def _():
                loss_ref[...] = jnp.zeros_like(loss_ref)

            loss_ref[...] += jnp.sum(per_example, axis=0, keepdims=True)

            @pl.when(i == num_blocks - 1)
            def _():
                loss_ref[...] = loss_ref[...] / float(batch_actual)
    return kernel


# ---------------------------------------------------------------------------
# Wrappers
# ---------------------------------------------------------------------------
def _resident_spec(arr):
    # Whole array as one block with a constant index_map: stays resident in
    # VMEM across the batch grid (never re-DMA'd between steps).
    return pl.BlockSpec(arr.shape, lambda i: (0,) * arr.ndim)


def mymodel_forward(data, params, label=None, compute_dtype=jnp.float32):
    """Mirrors MyModel.forward: returns logits, or (loss, logits) if label given."""
    w1, b1, w2, b2, w3, b3, w4, b4 = params
    B, F = data.shape
    L = w4.shape[1]

    if B <= _TM_CAP:
        tm, nb, bp = B, 1, B
    else:
        tm = _TM_CAP
        nb = pl.cdiv(B, tm)
        bp = nb * tm

    data_p = data if bp == B else jnp.pad(data, ((0, bp - B), (0, 0)))
    weight_ops = [w1, b1, w2, b2, w3, b3, w4, b4]

    compiler_params = pltpu.CompilerParams(
        dimension_semantics=("parallel",) if label is None else ("arbitrary",),
        vmem_limit_bytes=32 * 1024 * 1024)

    if label is None:
        kernel = make_logits_kernel(compute_dtype)
        if nb == 1:
            # Fast path: no grid / pipelining machinery for small batches.
            return pl.pallas_call(
                kernel,
                out_shape=jax.ShapeDtypeStruct((B, L), jnp.float32),
            )(data_p, *weight_ops)

        logits_p = pl.pallas_call(
            kernel,
            out_shape=jax.ShapeDtypeStruct((bp, L), jnp.float32),
            grid=(nb,),
            in_specs=[pl.BlockSpec((tm, F), lambda i: (i, 0))]
                     + [_resident_spec(a) for a in weight_ops],
            out_specs=pl.BlockSpec((tm, L), lambda i: (i, 0)),
            compiler_params=compiler_params,
        )(data_p, *weight_ops)
        return logits_p[:B]

    lab2d = label.astype(jnp.int32).reshape(B, 1)
    lab_p = lab2d if bp == B else jnp.pad(lab2d, ((0, bp - B), (0, 0)))
    kernel = make_loss_kernel(B, tm, nb, compute_dtype)

    if nb == 1:
        logits, loss = pl.pallas_call(
            kernel,
            out_shape=(jax.ShapeDtypeStruct((B, L), jnp.float32),
                       jax.ShapeDtypeStruct((1, 1), jnp.float32)),
        )(data_p, *weight_ops, lab_p)
        return loss[0, 0], logits

    logits_p, loss = pl.pallas_call(
        kernel,
        out_shape=(jax.ShapeDtypeStruct((bp, L), jnp.float32),
                   jax.ShapeDtypeStruct((1, 1), jnp.float32)),
        grid=(nb,),
        in_specs=[pl.BlockSpec((tm, F), lambda i: (i, 0))]
                 + [_resident_spec(a) for a in weight_ops]
                 + [pl.BlockSpec((tm, 1), lambda i: (i, 0))],
        out_specs=(pl.BlockSpec((tm, L), lambda i: (i, 0)),
                   pl.BlockSpec((1, 1), lambda i: (0, 0))),
        compiler_params=compiler_params,
    )(data_p, *weight_ops, lab_p)
    return loss[0, 0], logits_p[:B]


def init_params(key, input_size, num_labels):
    """Deterministic synthetic parameters for the 4 Linear layers (x @ W + b layout)."""
    dims = [(input_size, 32), (32, 64), (64, 32), (32, num_labels)]
    params = []
    for (fan_in, fan_out) in dims:
        key, kw, kb = jax.random.split(key, 3)
        bound = 1.0 / jnp.sqrt(fan_in)
        w = jax.random.uniform(kw, (fan_in, fan_out), jnp.float32, -bound, bound)
        b = jax.random.uniform(kb, (1, fan_out), jnp.float32, -bound, bound)
        params += [w, b]
    return tuple(params)


def _reference(data, params, label):
    w1, b1, w2, b2, w3, b3, w4, b4 = params
    logits = _mlp(data, w1, b1, w2, b2, w3, b3, w4, b4)
    logp = jax.nn.log_softmax(logits, axis=-1)
    loss = -jnp.mean(jnp.take_along_axis(logp, label[:, None], axis=-1))
    return loss, logits


if __name__ == "__main__":
    key = jax.random.PRNGKey(0)
    input_size, num_labels, batch = 16, 4, 8

    k_x, k_lab, k_p, k_x2, k_lab2 = jax.random.split(key, 5)
    data = jax.random.normal(k_x, (batch, input_size), jnp.float32)
    label = jax.random.randint(k_lab, (batch,), 0, num_labels, jnp.int32)
    params = init_params(k_p, input_size, num_labels)

    # --- small batch: no-grid fast path ------------------------------------
    logits = jax.block_until_ready(mymodel_forward(data, params, label=None))
    loss, logits2 = mymodel_forward(data, params, label=label)
    loss = jax.block_until_ready(loss)
    logits2 = jax.block_until_ready(logits2)

    ref_loss, ref_logits = _reference(data, params, label)
    assert jnp.allclose(logits, ref_logits, atol=1e-5, rtol=1e-5)
    assert jnp.allclose(logits2, ref_logits, atol=1e-5, rtol=1e-5)
    assert jnp.allclose(loss, ref_loss, atol=1e-5, rtol=1e-5)

    # --- larger batch: batch-tiled path (grid, padding, loss accumulator) ---
    batch2 = 1040   # forces TM=512, 3 grid steps, 496 padded rows masked
    data2 = jax.random.normal(k_x2, (batch2, input_size), jnp.float32)
    label2 = jax.random.randint(k_lab2, (batch2,), 0, num_labels, jnp.int32)

    logits_l = jax.block_until_ready(mymodel_forward(data2, params, label=None))
    loss_l, logits_l2 = mymodel_forward(data2, params, label=label2)
    loss_l = jax.block_until_ready(loss_l)
    logits_l2 = jax.block_until_ready(logits_l2)

    ref_loss2, ref_logits2 = _reference(data2, params, label2)
    assert jnp.allclose(logits_l, ref_logits2, atol=1e-5, rtol=1e-5)
    assert jnp.allclose(logits_l2, ref_logits2, atol=1e-5, rtol=1e-5)
    assert jnp.allclose(loss_l, ref_loss2, atol=2e-5, rtol=2e-5)

    print("KERNEL_OK")
</pallas_src>

<mosaic_0001>
module attributes {stable_mosaic.version = 11 : i64} {
  func.func @kernel(%arg0: memref<8x16xf32, #tpu.memory_space<vmem>>, %arg1: memref<16x32xf32, #tpu.memory_space<vmem>>, %arg2: memref<1x32xf32, #tpu.memory_space<vmem>>, %arg3: memref<32x64xf32, #tpu.memory_space<vmem>>, %arg4: memref<1x64xf32, #tpu.memory_space<vmem>>, %arg5: memref<64x32xf32, #tpu.memory_space<vmem>>, %arg6: memref<1x32xf32, #tpu.memory_space<vmem>>, %arg7: memref<32x4xf32, #tpu.memory_space<vmem>>, %arg8: memref<1x4xf32, #tpu.memory_space<vmem>>, %arg9: memref<8x4xf32, #tpu.memory_space<vmem>>) attributes {dimension_semantics = [], scalar_prefetch = 0 : i64, scratch_operands = 0 : i64, tpu.core_type = #tpu.core_type<tc>} {
    %c0 = arith.constant 0 : index
    %c0_0 = arith.constant 0 : index
    %0 = vector.load %arg0[%c0, %c0_0] : memref<8x16xf32, #tpu.memory_space<vmem>>, vector<8x16xf32>
    %c0_1 = arith.constant 0 : index
    %c0_2 = arith.constant 0 : index
    %1 = vector.load %arg1[%c0_1, %c0_2] : memref<16x32xf32, #tpu.memory_space<vmem>>, vector<16x32xf32>
    %c0_3 = arith.constant 0 : index
    %c0_4 = arith.constant 0 : index
    %2 = vector.load %arg2[%c0_3, %c0_4] : memref<1x32xf32, #tpu.memory_space<vmem>>, vector<1x32xf32>
    %c0_5 = arith.constant 0 : index
    %c0_6 = arith.constant 0 : index
    %3 = vector.load %arg3[%c0_5, %c0_6] : memref<32x64xf32, #tpu.memory_space<vmem>>, vector<32x64xf32>
    %c0_7 = arith.constant 0 : index
    %c0_8 = arith.constant 0 : index
    %4 = vector.load %arg4[%c0_7, %c0_8] : memref<1x64xf32, #tpu.memory_space<vmem>>, vector<1x64xf32>
    %c0_9 = arith.constant 0 : index
    %c0_10 = arith.constant 0 : index
    %5 = vector.load %arg5[%c0_9, %c0_10] : memref<64x32xf32, #tpu.memory_space<vmem>>, vector<64x32xf32>
    %c0_11 = arith.constant 0 : index
    %c0_12 = arith.constant 0 : index
    %6 = vector.load %arg6[%c0_11, %c0_12] : memref<1x32xf32, #tpu.memory_space<vmem>>, vector<1x32xf32>
    %c0_13 = arith.constant 0 : index
    %c0_14 = arith.constant 0 : index
    %7 = vector.load %arg7[%c0_13, %c0_14] : memref<32x4xf32, #tpu.memory_space<vmem>>, vector<32x4xf32>
    %c0_15 = arith.constant 0 : index
    %c0_16 = arith.constant 0 : index
    %8 = vector.load %arg8[%c0_15, %c0_16] : memref<1x4xf32, #tpu.memory_space<vmem>>, vector<1x4xf32>
    %cst = arith.constant dense<0.000000e+00> : vector<8x32xf32>
    %9 = tpu.matmul %0, %1, %cst {dimension_numbers = #tpu.dot_dimension_numbers<[1], [0], [0], [1], [0, 0, 1, 1], [], []>} : vector<8x16xf32>, vector<16x32xf32>, vector<8x32xf32> -> vector<8x32xf32>
    %10 = vector.broadcast %2 : vector<1x32xf32> to vector<8x32xf32>
    %11 = arith.addf %9, %10 : vector<8x32xf32>
    %cst_17 = arith.constant 0.000000e+00 : f32
    %12 = vector.broadcast %cst_17 : f32 to vector<8x32xf32>
    %13 = arith.maximumf %11, %12 : vector<8x32xf32>
    %cst_18 = arith.constant dense<0.000000e+00> : vector<8x64xf32>
    %14 = tpu.matmul %13, %3, %cst_18 {dimension_numbers = #tpu.dot_dimension_numbers<[1], [0], [0], [1], [0, 0, 1, 1], [], []>} : vector<8x32xf32>, vector<32x64xf32>, vector<8x64xf32> -> vector<8x64xf32>
    %15 = vector.broadcast %4 : vector<1x64xf32> to vector<8x64xf32>
    %16 = arith.addf %14, %15 : vector<8x64xf32>
    %cst_19 = arith.constant 0.000000e+00 : f32
    %17 = vector.broadcast %cst_19 : f32 to vector<8x64xf32>
    %18 = arith.maximumf %16, %17 : vector<8x64xf32>
    %cst_20 = arith.constant dense<0.000000e+00> : vector<8x32xf32>
    %19 = tpu.matmul %18, %5, %cst_20 {dimension_numbers = #tpu.dot_dimension_numbers<[1], [0], [0], [1], [0, 0, 1, 1], [], []>} : vector<8x64xf32>, vector<64x32xf32>, vector<8x32xf32> -> vector<8x32xf32>
    %20 = vector.broadcast %6 : vector<1x32xf32> to vector<8x32xf32>
    %21 = arith.addf %19, %20 : vector<8x32xf32>
    %cst_21 = arith.constant 0.000000e+00 : f32
    %22 = vector.broadcast %cst_21 : f32 to vector<8x32xf32>
    %23 = arith.maximumf %21, %22 : vector<8x32xf32>
    %cst_22 = arith.constant dense<0.000000e+00> : vector<8x4xf32>
    %24 = tpu.matmul %23, %7, %cst_22 {dimension_numbers = #tpu.dot_dimension_numbers<[1], [0], [0], [1], [0, 0, 1, 1], [], []>} : vector<8x32xf32>, vector<32x4xf32>, vector<8x4xf32> -> vector<8x4xf32>
    %25 = vector.broadcast %8 : vector<1x4xf32> to vector<8x4xf32>
    %26 = arith.addf %24, %25 : vector<8x4xf32>
    %c0_23 = arith.constant 0 : index
    %c0_24 = arith.constant 0 : index
    %27 = vector.load %arg9[%c0_23, %c0_24] : memref<8x4xf32, #tpu.memory_space<vmem>>, vector<8x4xf32>
    tpu.vector_store %arg9[%c0_23, %c0_24], %26 {strides = array<i32>} : memref<8x4xf32, #tpu.memory_space<vmem>>, vector<8x4xf32>,
    return
  }
}

</mosaic_0001>

<llo_original>
// kernel: tpu_custom_call.1
$region0: #{tpu_custom_call.1}
  #allocation0 [shape = 'u32[]', space=smem, size = 0x4, offset = 0x4, fixed_abs, tag = 'smem constant byte address 0x4 - core index']
  #allocation1 [shape = 'u32[144,128]{1,0:T(1,128)}', space=vmem, size = 0x12000, scoped, tag = 'internal scratch']
  %s0 = inlined_call_operand.vmem [shape: f32[8,16], index: 0, kind: input, shape index: {}]
  %s1 = inlined_call_operand.vmem [shape: f32[16,32], index: 1, kind: input, shape index: {}]
  %s2 = inlined_call_operand.vmem [shape: f32[1,32], index: 2, kind: input, shape index: {}]
  %s3 = inlined_call_operand.vmem [shape: f32[32,64], index: 3, kind: input, shape index: {}]
  %s4 = inlined_call_operand.vmem [shape: f32[1,64], index: 4, kind: input, shape index: {}]
  %s5 = inlined_call_operand.vmem [shape: f32[64,32], index: 5, kind: input, shape index: {}]
  %s6 = inlined_call_operand.vmem [shape: f32[1,32], index: 6, kind: input, shape index: {}]
  %s7 = inlined_call_operand.vmem [shape: f32[32,4], index: 7, kind: input, shape index: {}]
  %s8 = inlined_call_operand.vmem [shape: f32[1,4], index: 8, kind: input, shape index: {}]
  %s9 = inlined_call_operand.vmem [shape: f32[8,4], index: 9, kind: output, shape index: {}]
  %s10 = sld [smem:[#allocation0]]
  $region46: #{tpu_custom_call.1} parent=0
    _
  %s12 = ssub.s32 1, %s10
  %s13 = scalar_select 0, %s12, %s10
  // Predicated region
  $region2: #{tpu_custom_call.1} parent=0 // pred_check
    _
  $region3: #{tpu_custom_call.1} parent=0 // pred_check_branch
    %15 = sbr.rel (0) target = $region5
  $region4: #{tpu_custom_call.1} parent=0 // pred_region
    _
  $region5: #{tpu_custom_call.1} parent=0 // pred_fallthru
    _
  // Predicated region
  $region6: #{tpu_custom_call.1} parent=0 // pred_check
    _
  $region7: #{tpu_custom_call.1} parent=0 // pred_check_branch
    %17 = sbr.rel (0) target = $region9
  $region8: #{tpu_custom_call.1} parent=0 // pred_region
    _
  $region9: #{tpu_custom_call.1} parent=0 // pred_fallthru
    _
  // Predicated region
  $region10: #{tpu_custom_call.1} parent=0 // pred_check
    _
  $region11: #{tpu_custom_call.1} parent=0 // pred_check_branch
    %19 = sbr.rel (0) target = $region13
  $region12: #{tpu_custom_call.1} parent=0 // pred_region
    _
  $region13: #{tpu_custom_call.1} parent=0 // pred_fallthru
    _
  // Predicated region
  $region14: #{tpu_custom_call.1} parent=0 // pred_check
    _
  $region15: #{tpu_custom_call.1} parent=0 // pred_check_branch
    %21 = sbr.rel (0) target = $region17
  $region16: #{tpu_custom_call.1} parent=0 // pred_region
    _
  $region17: #{tpu_custom_call.1} parent=0 // pred_fallthru
    _
  // Predicated region
  $region18: #{tpu_custom_call.1} parent=0 // pred_check
    _
  $region19: #{tpu_custom_call.1} parent=0 // pred_check_branch
    %23 = sbr.rel (0) target = $region21
  $region20: #{tpu_custom_call.1} parent=0 // pred_region
    _
  $region21: #{tpu_custom_call.1} parent=0 // pred_fallthru
    _
  // Predicated region
  $region22: #{tpu_custom_call.1} parent=0 // pred_check
    _
  $region23: #{tpu_custom_call.1} parent=0 // pred_check_branch
    %25 = sbr.rel (0) target = $region25
  $region24: #{tpu_custom_call.1} parent=0 // pred_region
    _
  $region25: #{tpu_custom_call.1} parent=0 // pred_fallthru
    _
  // Predicated region
  $region26: #{tpu_custom_call.1} parent=0 // pred_check
    _
  $region27: #{tpu_custom_call.1} parent=0 // pred_check_branch
    %27 = sbr.rel (0) target = $region29
  $region28: #{tpu_custom_call.1} parent=0 // pred_region
    _
  $region29: #{tpu_custom_call.1} parent=0 // pred_fallthru
    _
  // Predicated region
  $region30: #{tpu_custom_call.1} parent=0 // pred_check
    _
  $region31: #{tpu_custom_call.1} parent=0 // pred_check_branch
    %29 = sbr.rel (0) target = $region33
  $region32: #{tpu_custom_call.1} parent=0 // pred_region
    _
  $region33: #{tpu_custom_call.1} parent=0 // pred_fallthru
    _
  // Predicated region
  $region34: #{tpu_custom_call.1} parent=0 // pred_check
    _
  $region35: #{tpu_custom_call.1} parent=0 // pred_check_branch
    %31 = sbr.rel (0) target = $region37
  $region36: #{tpu_custom_call.1} parent=0 // pred_region
    _
  $region37: #{tpu_custom_call.1} parent=0 // pred_fallthru
    _
  %v32 = vld [vmem:[%s0] sm:$0xff]
  %v33 = vld [vmem:[%s1] sm:$0xff]
  %v34 = vld [vmem:[%s1 + $0x8] sm:$0xff]
  %v35 = vld [vmem:[%s2] sm:$0x1]
  %v36 = vld [vmem:[%s3] sm:$0xff]
  %v37 = vld [vmem:[%s3 + $0x8] sm:$0xff]
  %v38 = vld [vmem:[%s3 + $0x10] sm:$0xff]
  %v39 = vld [vmem:[%s3 + $0x18] sm:$0xff]
  %v40 = vld [vmem:[%s4] sm:$0x1]
  %v41 = vld [vmem:[%s5] sm:$0xff]
  %v42 = vld [vmem:[%s5 + $0x8] sm:$0xff]
  %v43 = vld [vmem:[%s5 + $0x10] sm:$0xff]
  %v44 = vld [vmem:[%s5 + $0x18] sm:$0xff]
  %v45 = vld [vmem:[%s5 + $0x20] sm:$0xff]
  %v46 = vld [vmem:[%s5 + $0x28] sm:$0xff]
  %v47 = vld [vmem:[%s5 + $0x30] sm:$0xff]
  %v48 = vld [vmem:[%s5 + $0x38] sm:$0xff]
  %v49 = vld [vmem:[%s6] sm:$0x1]
  %v50 = vld [vmem:[%s7] sm:$0xff]
  %v51 = vld [vmem:[%s7 + $0x8] sm:$0xff]
  %v52 = vld [vmem:[%s7 + $0x10] sm:$0xff]
  %v53 = vld [vmem:[%s7 + $0x18] sm:$0xff]
  %v54 = vld [vmem:[%s8] sm:$0x1]
  %v56 = vlaneseq
  %v57 = vshrl.u32 %v56, 7
  %v58 = vsub.s32 0, %v57
  %v59 = vrot.slane %v35, %v58
  %vm61 = vcmask 130048
  %v63 = vsel %vm61, %v32, 0
  %65 = vmatprep.subr.mxu0 0.0
  %66 = vmatpush1.msra.mxu0 %v33
  %67 = vmatprep.subr.mxu0 0.0
  %68 = vmatpush1.msra.mxu0 %v34
  %69 = vmatprep.subr.mxu0 0.0
  %70 = vmatpush1.msra.mxu0 0.0
  %71 = vmatprep.subr.mxu0 0.0
  %72 = vmatpush1.msra.mxu0 0.0
  %73 = vmatprep.subr.mxu0 0.0
  %74 = vmatpush1.msra.mxu0 0.0
  %75 = vmatprep.subr.mxu0 0.0
  %76 = vmatpush1.msra.mxu0 0.0
  %77 = vmatprep.subr.mxu0 0.0
  %78 = vmatpush1.msra.mxu0 0.0
  %79 = vmatprep.subr.mxu0 0.0
  %80 = vmatpush1.msra.mxu0 0.0
  %81 = vmatprep.subr.mxu0 0.0
  %82 = vmatpush1.msra.mxu0 0.0
  %83 = vmatprep.subr.mxu0 0.0
  %84 = vmatpush1.msra.mxu0 0.0
  %85 = vmatprep.subr.mxu0 0.0
  %86 = vmatpush1.msra.mxu0 0.0
  %87 = vmatprep.subr.mxu0 0.0
  %88 = vmatpush1.msra.mxu0 0.0
  %89 = vmatprep.subr.mxu0 0.0
  %90 = vmatpush1.msra.mxu0 0.0
  %91 = vmatprep.subr.mxu0 0.0
  %92 = vmatpush1.msra.mxu0 0.0
  %93 = vmatprep.subr.mxu0 0.0
  %94 = vmatpush1.msra.mxu0 0.0
  %95 = vmatprep.subr.mxu0 0.0
  %96 = vmatpush1.msra.mxu0 0.0
  %97 = vmatprep.subr.mxu0 0.0
  %98 = vmatpush1.msra.mxu0 0.0
  %99 = vmatprep.subr.mxu0 0.0
  %100 = vmatpush1.msra.mxu0 0.0
  %101 = vmatprep.subr.mxu0 0.0
  %102 = vmatpush1.msra.mxu0 0.0
  %103 = vmatprep.subr.mxu0 0.0
  %104 = vmatpush1.msra.mxu0 0.0
  %105 = vmatprep.subr.mxu0 0.0
  %106 = vmatpush1.msra.mxu0 0.0
  %107 = vmatprep.subr.mxu0 0.0
  %108 = vmatpush1.msra.mxu0 0.0
  %109 = vmatprep.subr.mxu0 0.0
  %110 = vmatpush1.msra.mxu0 0.0
  %111 = vmatprep.subr.mxu0 0.0
  %112 = vmatpush1.msra.mxu0 0.0
  %113 = vmatprep.subr.mxu0 0.0
  %114 = vmatpush1.msra.mxu0 0.0
  %115 = vmatprep.subr.mxu0 0.0
  %116 = vmatpush1.msra.mxu0 0.0
  %117 = vmatprep.subr.mxu0 0.0
  %118 = vmatpush1.msra.mxu0 0.0
  %119 = vmatprep.subr.mxu0 0.0
  %120 = vmatpush1.msra.mxu0 0.0
  %121 = vmatprep.subr.mxu0 0.0
  %122 = vmatpush1.msra.mxu0 0.0
  %123 = vmatprep.subr.mxu0 0.0
  %124 = vmatpush1.msra.mxu0 0.0
  %125 = vmatprep.subr.mxu0 0.0
  %126 = vmatpush1.msra.mxu0 0.0
  %127 = vmatprep.subr.mxu0 0.0
  %128 = vmatpush1.msra.mxu0 0.0
  %129 = vmatprep.mubr.f32.mxu0 0.0
  %130 = vmatmul.mubr.f32.gmra.mrb[0].mxu0 %v63
  %v131 = vpop.f32.mrb[0].mxu0
  %v132 = vadd.f32 %v59, %v131
  %v133 = vpop.f32.mrb[0].mxu0
  %134 = vdwg.mxu0
  %v135 = vmax.f32 %v132, 0.0
  %v137 = vlaneseq
  %v138 = vshrl.u32 %v137, 7
  %v139 = vsub.s32 0, %v138
  %v140 = vrot.slane %v40, %v139
  %vm142 = vcmask 261120
  %v144 = vsel %vm142, %v135, 0
  %146 = vmatprep.subr.mxu0 0.0
  %147 = vmatpush1.msra.mxu0 %v36
  %148 = vmatprep.subr.mxu0 0.0
  %149 = vmatpush1.msra.mxu0 %v37
  %150 = vmatprep.subr.mxu0 0.0
  %151 = vmatpush1.msra.mxu0 %v38
  %152 = vmatprep.subr.mxu0 0.0
  %153 = vmatpush1.msra.mxu0 %v39
  %154 = vmatprep.subr.mxu0 0.0
  %155 = vmatpush1.msra.mxu0 0.0
  %156 = vmatprep.subr.mxu0 0.0
  %157 = vmatpush1.msra.mxu0 0.0
  %158 = vmatprep.subr.mxu0 0.0
  %159 = vmatpush1.msra.mxu0 0.0
  %160 = vmatprep.subr.mxu0 0.0
  %161 = vmatpush1.msra.mxu0 0.0
  %162 = vmatprep.subr.mxu0 0.0
  %163 = vmatpush1.msra.mxu0 0.0
  %164 = vmatprep.subr.mxu0 0.0
  %165 = vmatpush1.msra.mxu0 0.0
  %166 = vmatprep.subr.mxu0 0.0
  %167 = vmatpush1.msra.mxu0 0.0
  %168 = vmatprep.subr.mxu0 0.0
  %169 = vmatpush1.msra.mxu0 0.0
  %170 = vmatprep.subr.mxu0 0.0
  %171 = vmatpush1.msra.mxu0 0.0
  %172 = vmatprep.subr.mxu0 0.0
  %173 = vmatpush1.msra.mxu0 0.0
  %174 = vmatprep.subr.mxu0 0.0
  %175 = vmatpush1.msra.mxu0 0.0
  %176 = vmatprep.subr.mxu0 0.0
  %177 = vmatpush1.msra.mxu0 0.0
  %178 = vmatprep.subr.mxu0 0.0
  %179 = vmatpush1.msra.mxu0 0.0
  %180 = vmatprep.subr.mxu0 0.0
  %181 = vmatpush1.msra.mxu0 0.0
  %182 = vmatprep.subr.mxu0 0.0
  %183 = vmatpush1.msra.mxu0 0.0
  %184 = vmatprep.subr.mxu0 0.0
  %185 = vmatpush1.msra.mxu0 0.0
  %186 = vmatprep.subr.mxu0 0.0
  %187 = vmatpush1.msra.mxu0 0.0
  %188 = vmatprep.subr.mxu0 0.0
  %189 = vmatpush1.msra.mxu0 0.0
  %190 = vmatprep.subr.mxu0 0.0
  %191 = vmatpush1.msra.mxu0 0.0
  %192 = vmatprep.subr.mxu0 0.0
  %193 = vmatpush1.msra.mxu0 0.0
  %194 = vmatprep.subr.mxu0 0.0
  %195 = vmatpush1.msra.mxu0 0.0
  %196 = vmatprep.subr.mxu0 0.0
  %197 = vmatpush1.msra.mxu0 0.0
  %198 = vmatprep.subr.mxu0 0.0
  %199 = vmatpush1.msra.mxu0 0.0
  %200 = vmatprep.subr.mxu0 0.0
  %201 = vmatpush1.msra.mxu0 0.0
  %202 = vmatprep.subr.mxu0 0.0
  %203 = vmatpush1.msra.mxu0 0.0
  %204 = vmatprep.subr.mxu0 0.0
  %205 = vmatpush1.msra.mxu0 0.0
  %206 = vmatprep.subr.mxu0 0.0
  %207 = vmatpush1.msra.mxu0 0.0
  %208 = vmatprep.subr.mxu0 0.0
  %209 = vmatpush1.msra.mxu0 0.0
  %210 = vmatprep.mubr.f32.mxu0 0.0
  %211 = vmatmul.mubr.f32.gmra.mrb[0].mxu0 %v144
  %v212 = vpop.f32.mrb[0].mxu0
  %v213 = vadd.f32 %v140, %v212
  %v214 = vpop.f32.mrb[0].mxu0
  %215 = vdwg.mxu0
  %v216 = vmax.f32 %v213, 0.0
  %v218 = vlaneseq
  %v219 = vshrl.u32 %v218, 7
  %v220 = vsub.s32 0, %v219
  %v221 = vrot.slane %v49, %v220
  %vm223 = vcmask 523264
  %v225 = vsel %vm223, %v216, 0
  %227 = vmatprep.subr.mxu0 0.0
  %228 = vmatpush1.msra.mxu0 %v41
  %229 = vmatprep.subr.mxu0 0.0
  %230 = vmatpush1.msra.mxu0 %v42
  %231 = vmatprep.subr.mxu0 0.0
  %232 = vmatpush1.msra.mxu0 %v43
  %233 = vmatprep.subr.mxu0 0.0
  %234 = vmatpush1.msra.mxu0 %v44
  %235 = vmatprep.subr.mxu0 0.0
  %236 = vmatpush1.msra.mxu0 %v45
  %237 = vmatprep.subr.mxu0 0.0
  %238 = vmatpush1.msra.mxu0 %v46
  %239 = vmatprep.subr.mxu0 0.0
  %240 = vmatpush1.msra.mxu0 %v47
  %241 = vmatprep.subr.mxu0 0.0
  %242 = vmatpush1.msra.mxu0 %v48
  %243 = vmatprep.subr.mxu0 0.0
  %244 = vmatpush1.msra.mxu0 0.0
  %245 = vmatprep.subr.mxu0 0.0
  %246 = vmatpush1.msra.mxu0 0.0
  %247 = vmatprep.subr.mxu0 0.0
  %248 = vmatpush1.msra.mxu0 0.0
  %249 = vmatprep.subr.mxu0 0.0
  %250 = vmatpush1.msra.mxu0 0.0
  %251 = vmatprep.subr.mxu0 0.0
  %252 = vmatpush1.msra.mxu0 0.0
  %253 = vmatprep.subr.mxu0 0.0
  %254 = vmatpush1.msra.mxu0 0.0
  %255 = vmatprep.subr.mxu0 0.0
  %256 = vmatpush1.msra.mxu0 0.0
  %257 = vmatprep.subr.mxu0 0.0
  %258 = vmatpush1.msra.mxu0 0.0
  %259 = vmatprep.subr.mxu0 0.0
  %260 = vmatpush1.msra.mxu0 0.0
  %261 = vmatprep.subr.mxu0 0.0
  %262 = vmatpush1.msra.mxu0 0.0
  %263 = vmatprep.subr.mxu0 0.0
  %264 = vmatpush1.msra.mxu0 0.0
  %265 = vmatprep.subr.mxu0 0.0
  %266 = vmatpush1.msra.mxu0 0.0
  %267 = vmatprep.subr.mxu0 0.0
  %268 = vmatpush1.msra.mxu0 0.0
  %269 = vmatprep.subr.mxu0 0.0
  %270 = vmatpush1.msra.mxu0 0.0
  %271 = vmatprep.subr.mxu0 0.0
  %272 = vmatpush1.msra.mxu0 0.0
  %273 = vmatprep.subr.mxu0 0.0
  %274 = vmatpush1.msra.mxu0 0.0
  %275 = vmatprep.subr.mxu0 0.0
  %276 = vmatpush1.msra.mxu0 0.0
  %277 = vmatprep.subr.mxu0 0.0
  %278 = vmatpush1.msra.mxu0 0.0
  %279 = vmatprep.subr.mxu0 0.0
  %280 = vmatpush1.msra.mxu0 0.0
  %281 = vmatprep.subr.mxu0 0.0
  %282 = vmatpush1.msra.mxu0 0.0
  %283 = vmatprep.subr.mxu0 0.0
  %284 = vmatpush1.msra.mxu0 0.0
  %285 = vmatprep.subr.mxu0 0.0
  %286 = vmatpush1.msra.mxu0 0.0
  %287 = vmatprep.subr.mxu0 0.0
  %288 = vmatpush1.msra.mxu0 0.0
  %289 = vmatprep.subr.mxu0 0.0
  %290 = vmatpush1.msra.mxu0 0.0
  %291 = vmatprep.mubr.f32.mxu0 0.0
  %292 = vmatmul.mubr.f32.gmra.mrb[0].mxu0 %v225
  %v293 = vpop.f32.mrb[0].mxu0
  %v294 = vadd.f32 %v221, %v293
  %v295 = vpop.f32.mrb[0].mxu0
  %296 = vdwg.mxu0
  %v297 = vmax.f32 %v294, 0.0
  %v299 = vlaneseq
  %v300 = vshrl.u32 %v299, 7
  %v301 = vsub.s32 0, %v300
  %v302 = vrot.slane %v54, %v301
  %v305 = vsel %vm142, %v297, 0
  %307 = vmatprep.subr.mxu0 0.0
  %308 = vmatpush1.msra.mxu0 %v50
  %309 = vmatprep.subr.mxu0 0.0
  %310 = vmatpush1.msra.mxu0 %v51
  %311 = vmatprep.subr.mxu0 0.0
  %312 = vmatpush1.msra.mxu0 %v52
  %313 = vmatprep.subr.mxu0 0.0
  %314 = vmatpush1.msra.mxu0 %v53
  %315 = vmatprep.subr.mxu0 0.0
  %316 = vmatpush1.msra.mxu0 0.0
  %317 = vmatprep.subr.mxu0 0.0
  %318 = vmatpush1.msra.mxu0 0.0
  %319 = vmatprep.subr.mxu0 0.0
  %320 = vmatpush1.msra.mxu0 0.0
  %321 = vmatprep.subr.mxu0 0.0
  %322 = vmatpush1.msra.mxu0 0.0
  %323 = vmatprep.subr.mxu0 0.0
  %324 = vmatpush1.msra.mxu0 0.0
  %325 = vmatprep.subr.mxu0 0.0
  %326 = vmatpush1.msra.mxu0 0.0
  %327 = vmatprep.subr.mxu0 0.0
  %328 = vmatpush1.msra.mxu0 0.0
  %329 = vmatprep.subr.mxu0 0.0
  %330 = vmatpush1.msra.mxu0 0.0
  %331 = vmatprep.subr.mxu0 0.0
  %332 = vmatpush1.msra.mxu0 0.0
  %333 = vmatprep.subr.mxu0 0.0
  %334 = vmatpush1.msra.mxu0 0.0
  %335 = vmatprep.subr.mxu0 0.0
  %336 = vmatpush1.msra.mxu0 0.0
  %337 = vmatprep.subr.mxu0 0.0
  %338 = vmatpush1.msra.mxu0 0.0
  %339 = vmatprep.subr.mxu0 0.0
  %340 = vmatpush1.msra.mxu0 0.0
  %341 = vmatprep.subr.mxu0 0.0
  %342 = vmatpush1.msra.mxu0 0.0
  %343 = vmatprep.subr.mxu0 0.0
  %344 = vmatpush1.msra.mxu0 0.0
  %345 = vmatprep.subr.mxu0 0.0
  %346 = vmatpush1.msra.mxu0 0.0
  %347 = vmatprep.subr.mxu0 0.0
  %348 = vmatpush1.msra.mxu0 0.0
  %349 = vmatprep.subr.mxu0 0.0
  %350 = vmatpush1.msra.mxu0 0.0
  %351 = vmatprep.subr.mxu0 0.0
  %352 = vmatpush1.msra.mxu0 0.0
  %353 = vmatprep.subr.mxu0 0.0
  %354 = vmatpush1.msra.mxu0 0.0
  %355 = vmatprep.subr.mxu0 0.0
  %356 = vmatpush1.msra.mxu0 0.0
  %357 = vmatprep.subr.mxu0 0.0
  %358 = vmatpush1.msra.mxu0 0.0
  %359 = vmatprep.subr.mxu0 0.0
  %360 = vmatpush1.msra.mxu0 0.0
  %361 = vmatprep.subr.mxu0 0.0
  %362 = vmatpush1.msra.mxu0 0.0
  %363 = vmatprep.subr.mxu0 0.0
  %364 = vmatpush1.msra.mxu0 0.0
  %365 = vmatprep.subr.mxu0 0.0
  %366 = vmatpush1.msra.mxu0 0.0
  %367 = vmatprep.subr.mxu0 0.0
  %368 = vmatpush1.msra.mxu0 0.0
  %369 = vmatprep.subr.mxu0 0.0
  %370 = vmatpush1.msra.mxu0 0.0
  %371 = vmatprep.mubr.f32.mxu0 0.0
  %372 = vmatmul.mubr.f32.gmra.mrb[0].mxu0 %v305
  %v373 = vpop.f32.mrb[0].mxu0
  %v374 = vadd.f32 %v302, %v373
  %v375 = vpop.f32.mrb[0].mxu0
  %376 = vdwg.mxu0
  %vm377 = vcmask 31744
  %378 = vst.msk [vmem:[%s9] sm:$0xff] %vm377, %v374
  // Predicated region
  $region38: #{tpu_custom_call.1} parent=0 // pred_check
    _
  $region39: #{tpu_custom_call.1} parent=0 // pred_check_branch
    %380 = sbr.rel (0) target = $region41
  $region40: #{tpu_custom_call.1} parent=0 // pred_region
    _
  $region41: #{tpu_custom_call.1} parent=0 // pred_fallthru
    _
  // Predicated region
  $region42: #{tpu_custom_call.1} parent=0 // pred_check
    _
  $region43: #{tpu_custom_call.1} parent=0 // pred_check_branch
    %382 = sbr.rel (0) target = $region45
  $region44: #{tpu_custom_call.1} parent=0 // pred_region
    _
  $region45: #{tpu_custom_call.1} parent=0 // pred_fallthru
    _

</llo_original>
